<compile_context>
chip_gen: v7x
topology: tpu7x:2x2x1
jax: 0.10.0
libtpu: 0.0.40
codegen_flags: <defaults>
</compile_context>

<pallas_src>
import functools
import math

import jax
import jax.numpy as jnp
from jax.experimental import pallas as pl
from jax.experimental.pallas import tpu as pltpu

_LANE = 128
_SUB = 8
_ELEM_BLOCK_ROWS = 2048      # 1 MiB per f32 buffer for elementwise kernels
_SUM_BLOCK_ROWS = 1024       # 512 KiB per f32 sample-row-chunk for reductions
_reduction_modes = ('none', 'mean', 'sum')


# ------------------------------ small helpers -------------------------------

def _cdiv(a, b):
    return -(-a // b)


def _round_up(x, m):
    return _cdiv(x, m) * m


@functools.lru_cache(maxsize=1)
def _vmem_params():
    """(vmem_limit_bytes, reduction_block_budget_bytes) per TPU generation."""
    try:
        cap = pltpu.get_tpu_info().vmem_capacity_bytes
    except Exception:                                   # unknown / interpret
        cap = None
    if cap is not None and cap >= 100 * 1024 * 1024:    # v5e / v6e: 128 MiB VMEM
        return 64 * 1024 * 1024, 32 * 1024 * 1024
    if cap is not None:                                 # v7x: 64 MiB VMEM
        return 32 * 1024 * 1024, 16 * 1024 * 1024
    return 32 * 1024 * 1024, 12 * 1024 * 1024           # conservative fallback


def _flat_rows(x):
    """Flatten to (rows, 128); zero-pad only if not lane aligned."""
    flat = x.reshape(-1)
    pad = (-flat.shape[0]) % _LANE
    if pad:
        flat = jnp.pad(flat, (0, pad))
    return flat.reshape(-1, _LANE)


def _prep_hw(x, n, ch, hw):
    """Reshape to (n, ch, rows_hw, 128); zero-pad hw only if not lane aligned."""
    pad = (-hw) % _LANE
    x2 = x.reshape(n, ch, hw)
    if pad:
        x2 = jnp.pad(x2, ((0, 0), (0, 0), (0, pad)))
    return x2.reshape(n, ch, -1, _LANE)


def _prep_per_sample(x, n, per):
    """Reshape to (n, rows, 128); zero-pad only if not lane aligned."""
    pad = (-per) % _LANE
    x2 = x.reshape(n, per)
    if pad:
        x2 = jnp.pad(x2, ((0, 0), (0, pad)))
    return x2.reshape(n, -1, _LANE)


def _elem_block_rows(rows):
    return max(_SUB, min(_ELEM_BLOCK_ROWS, _round_up(rows, _SUB)))


def _sum_block_rows(rows, n, itemsizes, max_rows=None):
    """Row-chunk size for (n, BR, 128) reduction blocks under the VMEM budget."""
    budget = _vmem_params()[1]
    max_rows = max_rows or _SUM_BLOCK_ROWS
    per_row = 2 * n * _LANE * sum(itemsizes)   # double-buffered input bytes/row
    br = min(budget // max(per_row, 1), max_rows, _round_up(rows, _SUB))
    return max(_SUB, (br // _SUB) * _SUB)


def _split_chunks(rows, br):
    """(nsplit, cps, need_mask, blk_index_fn) for a row-chunked reduce grid."""
    chunks = _cdiv(rows, br)
    nsplit = 2 if chunks >= 2 else 1            # keep both v7x TensorCores busy
    cps = _cdiv(chunks, nsplit)
    need_mask = nsplit * cps * br > rows
    if nsplit * cps > chunks:
        # Odd chunk count: the last step of split 1 overshoots; clamp the DMA
        # block index (re-reads the last real block) and rely on the in-kernel
        # row mask (computed from the UNclamped index) to zero its contribution.
        def blk(s, k):
            return jnp.minimum(s * cps + k, chunks - 1)
    else:
        def blk(s, k):
            return s * cps + k
    return nsplit, cps, need_mask, blk


# ----------------------------- Pallas kernels ------------------------------

def _abs_kernel(p_ref, t_ref, o_ref):
    # reduction='none', weight=None (dtype promotion happens in-VPU)
    dt = o_ref.dtype
    o_ref[...] = jnp.abs(p_ref[...].astype(dt) - t_ref[...].astype(dt))


def _abs_w_kernel(p_ref, t_ref, w_ref, o_ref):
    # reduction='none', weighted (w block may be shared across the C axis)
    dt = o_ref.dtype
    d = jnp.abs(p_ref[...].astype(dt) - t_ref[...].astype(dt))
    o_ref[...] = d * w_ref[...].astype(dt)


def _make_flat_sum_kernel(cps, br, rows, need_mask, weighted):
    """Per-sample reductions over grid (nsplit, cps); blocks are (N, BR, 128)."""

    def row_mask(shape, k):
        row0 = (pl.program_id(0) * cps + k) * br
        rid = jax.lax.broadcasted_iota(jnp.int32, shape, 1) + row0
        return rid < rows

    if weighted:
        def kernel(p_ref, t_ref, w_ref, lsum_ref, wsum_ref, lacc_ref, wacc_ref):
            k = pl.program_id(1)

            @pl.when(k == 0)
            def _():
                lacc_ref[...] = jnp.zeros_like(lacc_ref)
                wacc_ref[...] = jnp.zeros_like(wacc_ref)

            w = w_ref[...].astype(jnp.float32)
            d = jnp.abs(p_ref[...].astype(jnp.float32)
                        - t_ref[...].astype(jnp.float32)) * w
            if need_mask:
                m = row_mask(p_ref.shape, k)
                d = jnp.where(m, d, 0.0)
                w = jnp.where(m, w, 0.0)
            lacc_ref[...] += jnp.sum(d, axis=1)
            wacc_ref[...] += jnp.sum(w, axis=1)

            @pl.when(k == pl.num_programs(1) - 1)
            def _():
                lsum_ref[...] = jnp.sum(lacc_ref[...], axis=1, keepdims=True)
                wsum_ref[...] = jnp.sum(wacc_ref[...], axis=1, keepdims=True)

        return kernel

    def kernel(p_ref, t_ref, lsum_ref, lacc_ref):
        k = pl.program_id(1)

        @pl.when(k == 0)
        def _():
            lacc_ref[...] = jnp.zeros_like(lacc_ref)

        d = jnp.abs(p_ref[...].astype(jnp.float32)
                    - t_ref[...].astype(jnp.float32))
        if need_mask:
            d = jnp.where(row_mask(p_ref.shape, k), d, 0.0)
        lacc_ref[...] += jnp.sum(d, axis=1)

        @pl.when(k == pl.num_programs(1) - 1)
        def _():
            lsum_ref[...] = jnp.sum(lacc_ref[...], axis=1, keepdims=True)

    return kernel


def _make_cbcast_sum_kernel(cps, br, rows, need_mask):
    """Channel-broadcast weighted reductions over grid (nsplit, cps, C)."""

    def kernel(p_ref, t_ref, w_ref, lsum_ref, wsum_ref, lacc_ref, wacc_ref):
        k = pl.program_id(1)
        j = pl.program_id(2)

        @pl.when(jnp.logical_and(k == 0, j == 0))
        def _():
            lacc_ref[...] = jnp.zeros_like(lacc_ref)
            wacc_ref[...] = jnp.zeros_like(wacc_ref)

        w = w_ref[...].astype(jnp.float32)
        d = jnp.abs(p_ref[...].astype(jnp.float32)
                    - t_ref[...].astype(jnp.float32)) * w
        if need_mask:
            row0 = (pl.program_id(0) * cps + k) * br
            rid = jax.lax.broadcasted_iota(jnp.int32, p_ref.shape, 1) + row0
            m = rid < rows
            d = jnp.where(m, d, 0.0)
            w = jnp.where(m, w, 0.0)
        lacc_ref[...] += jnp.sum(d, axis=1)
        wacc_ref[...] += jnp.sum(w, axis=1)

        @pl.when(jnp.logical_and(k == pl.num_programs(1) - 1,
                                 j == pl.num_programs(2) - 1))
        def _():
            lsum_ref[...] = jnp.sum(lacc_ref[...], axis=1, keepdims=True)
            wsum_ref[...] = jnp.sum(wacc_ref[...], axis=1, keepdims=True)

    return kernel


# ------------------------------ host wrappers -------------------------------

def _elementwise_flat(pred, target, weight=None):
    """reduction='none'; weight is None or full pred shape."""
    shape = pred.shape
    total = math.prod(shape)
    dts = [pred.dtype, target.dtype] + ([] if weight is None else [weight.dtype])
    out_dtype = jnp.result_type(*dts)

    p, t = _flat_rows(pred), _flat_rows(target)
    rows = p.shape[0]
    br = _elem_block_rows(rows)
    spec = pl.BlockSpec((br, _LANE), lambda i: (i, 0))

    if weight is None:
        kernel, args, n_in = _abs_kernel, (p, t), 2
    else:
        kernel, args, n_in = _abs_w_kernel, (p, t, _flat_rows(weight)), 3

    out = pl.pallas_call(
        kernel,
        out_shape=jax.ShapeDtypeStruct((rows, _LANE), out_dtype),
        grid=(_cdiv(rows, br),),
        in_specs=[spec] * n_in,
        out_specs=spec,
        compiler_params=pltpu.CompilerParams(
            dimension_semantics=("parallel",),
            vmem_limit_bytes=_vmem_params()[0]),
    )(*args)
    return out.reshape(-1)[:total].reshape(shape)


def _elementwise_cbcast(pred, target, weight):
    """reduction='none' with (N,1,H,W)-style weight, never materialized."""
    shape = pred.shape
    n, c = shape[0], shape[1]
    hw = math.prod(shape[2:])
    out_dtype = jnp.result_type(pred.dtype, target.dtype, weight.dtype)

    p = _prep_hw(pred, n, c, hw)
    t = _prep_hw(target, n, c, hw)
    w = _prep_hw(weight, n, 1, hw)[:, 0]          # (n, rows, 128)
    rows = p.shape[2]
    br = _elem_block_rows(rows)
    chunks = _cdiv(rows, br)

    # C innermost: the weight index_map ignores it, so each weight tile is
    # DMA'd once per (sample, row-chunk) and reused across all channels.
    pt_spec = pl.BlockSpec((None, None, br, _LANE), lambda i, j, k: (i, k, j, 0))
    w_spec = pl.BlockSpec((None, br, _LANE), lambda i, j, k: (i, j, 0))

    out = pl.pallas_call(
        _abs_w_kernel,
        out_shape=jax.ShapeDtypeStruct((n, c, rows, _LANE), out_dtype),
        grid=(n, chunks, c),
        in_specs=[pt_spec, pt_spec, w_spec],
        out_specs=pt_spec,
        compiler_params=pltpu.CompilerParams(
            dimension_semantics=("parallel", "parallel", "arbitrary"),
            vmem_limit_bytes=_vmem_params()[0]),
    )(p, t, w)
    return out.reshape(n, c, -1)[:, :, :hw].reshape(shape)


def _per_sample_sums_flat(pred, target, weight=None, max_block_rows=None):
    """Per-sample sum(|p-t|*w) (and sum(w)); weight None or full pred shape."""
    n = pred.shape[0]
    per = math.prod(pred.shape[1:])
    p = _prep_per_sample(pred, n, per)
    t = _prep_per_sample(target, n, per)
    args = [p, t]
    if weight is not None:
        args.append(_prep_per_sample(weight, n, per))
    rows = p.shape[1]

    br = _sum_block_rows(rows, n, [a.dtype.itemsize for a in args],
                         max_block_rows)
    nsplit, cps, need_mask, blk = _split_chunks(rows, br)

    in_spec = pl.BlockSpec((n, br, _LANE), lambda s, k: (0, blk(s, k), 0))
    out_spec = pl.BlockSpec((None, n, 1), lambda s, k: (s, 0, 0))
    cp = pltpu.CompilerParams(dimension_semantics=("parallel", "arbitrary"),
                              vmem_limit_bytes=_vmem_params()[0])

    if weight is None:
        kernel = _make_flat_sum_kernel(cps, br, rows, need_mask, weighted=False)
        lsum = pl.pallas_call(
            kernel,
            out_shape=jax.ShapeDtypeStruct((nsplit, n, 1), jnp.float32),
            grid=(nsplit, cps),
            in_specs=[in_spec, in_spec],
            out_specs=out_spec,
            scratch_shapes=[pltpu.VMEM((n, _LANE), jnp.float32)],
            compiler_params=cp,
        )(*args)
        return jnp.sum(lsum, axis=(0, 2)), None

    kernel = _make_flat_sum_kernel(cps, br, rows, need_mask, weighted=True)
    lsum, wsum = pl.pallas_call(
        kernel,
        out_shape=(jax.ShapeDtypeStruct((nsplit, n, 1), jnp.float32),
                   jax.ShapeDtypeStruct((nsplit, n, 1), jnp.float32)),
        grid=(nsplit, cps),
        in_specs=[in_spec] * 3,
        out_specs=(out_spec, out_spec),
        scratch_shapes=[pltpu.VMEM((n, _LANE), jnp.float32),
                        pltpu.VMEM((n, _LANE), jnp.float32)],
        compiler_params=cp,
    )(*args)
    return jnp.sum(lsum, axis=(0, 2)), jnp.sum(wsum, axis=(0, 2))


def _per_sample_sums_cbcast(pred, target, weight, max_block_rows=None):
    """Per-sample sums with (N,1,H,W)-style weight (never materialized).

    Leading 'parallel' axis is a 2-way row split (balanced 2-TC on v7x); C is
    the innermost axis so the weight tile is reused across channels without
    re-DMA.  The weight-sum counts each channel, matching the expanded-weight
    semantics of the PyTorch reference."""
    n, c = pred.shape[0], pred.shape[1]
    hw = math.prod(pred.shape[2:])
    p = _prep_hw(pred, n, c, hw)
    t = _prep_hw(target, n, c, hw)
    w = _prep_hw(weight, n, 1, hw)[:, 0]          # (n, rows, 128)
    rows = p.shape[2]

    itemsizes = [p.dtype.itemsize, t.dtype.itemsize, w.dtype.itemsize]
    br = _sum_block_rows(rows, n, itemsizes, max_block_rows)
    nsplit, cps, need_mask, blk = _split_chunks(rows, br)

    pt_spec = pl.BlockSpec((n, None, br, _LANE),
                           lambda s, k, j: (0, j, blk(s, k), 0))
    w_spec = pl.BlockSpec((n, br, _LANE), lambda s, k, j: (0, blk(s, k), 0))
    out_spec = pl.BlockSpec((None, n, 1), lambda s, k, j: (s, 0, 0))

    kernel = _make_cbcast_sum_kernel(cps, br, rows, need_mask)
    lsum, wsum = pl.pallas_call(
        kernel,
        out_shape=(jax.ShapeDtypeStruct((nsplit, n, 1), jnp.float32),
                   jax.ShapeDtypeStruct((nsplit, n, 1), jnp.float32)),
        grid=(nsplit, cps, c),
        in_specs=[pt_spec, pt_spec, w_spec],
        out_specs=(out_spec, out_spec),
        scratch_shapes=[pltpu.VMEM((n, _LANE), jnp.float32),
                        pltpu.VMEM((n, _LANE), jnp.float32)],
        compiler_params=pltpu.CompilerParams(
            dimension_semantics=("parallel", "arbitrary", "arbitrary"),
            vmem_limit_bytes=_vmem_params()[0]),
    )(p, t, w)
    return jnp.sum(lsum, axis=(0, 2)), jnp.sum(wsum, axis=(0, 2))


def _per_sample_sums(pred, target, weight, w_mode):
    """Dispatch + host-level batch chunking so (N, BR, 128) blocks fit VMEM."""
    n = pred.shape[0]
    itemsizes = [pred.dtype.itemsize, target.dtype.itemsize]
    if weight is not None:
        itemsizes.append(weight.dtype.itemsize)
    budget = _vmem_params()[1]
    cap = max(1, budget // (2 * _SUB * _LANE * sum(itemsizes)))

    def one(pc, tc, wc):
        if w_mode == 'cbcast':
            return _per_sample_sums_cbcast(pc, tc, wc)
        return _per_sample_sums_flat(pc, tc, wc)

    if n <= cap:
        return one(pred, target, weight)

    lsums, wsums = [], []
    for i in range(0, n, cap):
        l, ws = one(pred[i:i + cap], target[i:i + cap],
                    None if weight is None else weight[i:i + cap])
        lsums.append(l)
        wsums.append(ws)
    lsum = jnp.concatenate(lsums)
    wsum = None if weight is None else jnp.concatenate(wsums)
    return lsum, wsum


# --------------------------------- module -----------------------------------

class L1Loss:
    """JAX/Pallas port of lqit L1Loss (masked_loss + mask_reduce_loss)."""

    def __init__(self, loss_weight=1.0, reduction='mean', sample_wise=False):
        if reduction not in _reduction_modes:
            raise ValueError(f'Unsupported reduction mode: {reduction}. '
                             f'Supported ones are: {_reduction_modes}')
        self.loss_weight = loss_weight
        self.reduction = reduction
        self.sample_wise = sample_wise

    def __call__(self, pred, target, weight=None, **kwargs):
        pred = jnp.asarray(pred)
        target = jnp.asarray(target)
        # No host-side dtype promotion / padding pre-passes: kernels cast
        # in-VPU; padding only happens when shapes are not lane-aligned.

        w = None
        w_mode = 'none'
        if weight is not None:
            w = jnp.asarray(weight)
            if w.shape == pred.shape:
                w_mode = 'full'
            elif (pred.ndim >= 2 and w.ndim == pred.ndim
                  and w.shape[0] == pred.shape[0] and w.shape[1] == 1
                  and w.shape[2:] == pred.shape[2:] and pred.shape[1] > 1):
                w_mode = 'cbcast'               # (N,1,H,W)-style weight
            else:
                # TODO(synk): scalar / (N,1,1,1)-style weights could be passed
                # as SMEM scalars instead of being materialized here.
                w = jnp.broadcast_to(w, pred.shape)
                w_mode = 'full'

        if self.reduction == 'none':
            if w_mode == 'cbcast':
                loss = _elementwise_cbcast(pred, target, w)
            else:
                loss = _elementwise_flat(pred, target,
                                         w if w_mode == 'full' else None)
            return self.loss_weight * loss

        # 'mean' / 'sum'
        lsum, wsum = _per_sample_sums(pred, target, w, w_mode)

        if self.reduction == 'sum':
            loss = jnp.sum(lsum)
        else:  # 'mean'
            if weight is None:
                loss = jnp.sum(lsum) / math.prod(pred.shape)
            else:
                eps = 1e-12
                if self.sample_wise:
                    loss = jnp.sum(lsum / (wsum + eps)) / pred.shape[0]
                else:
                    loss = jnp.sum(lsum) / (jnp.sum(wsum) + eps)
        return self.loss_weight * loss


# --------------------------------- demo -------------------------------------

if __name__ == "__main__":
    key = jax.random.PRNGKey(0)
    k1, k2, k3, k4, k5, k6 = jax.random.split(key, 6)
    N, C, H, W = 2, 4, 16, 16
    pred = jax.random.normal(k1, (N, C, H, W), jnp.float32)
    target = jax.random.normal(k2, (N, C, H, W), jnp.float32)
    weight_c1 = jax.random.uniform(k3, (N, 1, H, W), jnp.float32)
    weight_full = jax.random.uniform(k4, (N, C, H, W), jnp.float32)

    # default module: reduction='mean', weight=None  (unweighted sum kernel)
    loss_mean = jax.block_until_ready(L1Loss()(pred, target))
    assert jnp.allclose(loss_mean, jnp.mean(jnp.abs(pred - target)),
                        rtol=1e-5, atol=1e-5)

    # reduction='sum', weight=None
    loss_sum = jax.block_until_ready(L1Loss(reduction='sum')(pred, target))
    assert jnp.allclose(loss_sum, jnp.sum(jnp.abs(pred - target)),
                        rtol=1e-5, atol=1e-4)

    # reduction='none', unweighted
    loss_none = jax.block_until_ready(
        L1Loss(loss_weight=2.0, reduction='none')(pred, target))
    assert loss_none.shape == (N, C, H, W)
    assert jnp.allclose(loss_none, 2.0 * jnp.abs(pred - target),
                        rtol=1e-5, atol=1e-5)

    # reduction='none', channel-broadcast weight (weight never materialized)
    loss_none_w = jax.block_until_ready(
        L1Loss(reduction='none')(pred, target, weight=weight_c1))
    assert jnp.allclose(loss_none_w, jnp.abs(pred - target) * weight_c1,
                        rtol=1e-5, atol=1e-5)

    # weighted mean, sample_wise=True, channel-broadcast weight
    loss_sw = jax.block_until_ready(
        L1Loss(sample_wise=True)(pred, target, weight=weight_c1))
    w_full = jnp.broadcast_to(weight_c1, pred.shape)
    wl = jnp.abs(pred - target) * w_full
    ws = jnp.sum(w_full, axis=(1, 2, 3))
    ref_sw = jnp.sum(jnp.sum(wl, axis=(1, 2, 3)) / (ws + 1e-12)) / N
    assert jnp.allclose(loss_sw, ref_sw, rtol=1e-5, atol=1e-5)

    # weighted mean, sample_wise=False, full-shape weight
    loss_wm = jax.block_until_ready(
        L1Loss()(pred, target, weight=weight_full))
    ref_wm = jnp.sum(jnp.abs(pred - target) * weight_full) / (
        jnp.sum(weight_full) + 1e-12)
    assert jnp.allclose(loss_wm, ref_wm, rtol=1e-5, atol=1e-5)

    # odd spatial size: exercises lane padding + in-kernel tail masking
    pred_o = jax.random.normal(k5, (2, 3, 17, 17), jnp.float32)
    target_o = jax.random.normal(k6, (2, 3, 17, 17), jnp.float32)
    loss_o = jax.block_until_ready(L1Loss()(pred_o, target_o))
    assert jnp.allclose(loss_o, jnp.mean(jnp.abs(pred_o - target_o)),
                        rtol=1e-5, atol=1e-5)
    loss_o_none = jax.block_until_ready(
        L1Loss(reduction='none')(pred_o, target_o))
    assert jnp.allclose(loss_o_none, jnp.abs(pred_o - target_o),
                        rtol=1e-5, atol=1e-5)

    # odd chunk count: exercises the forced 2-way megacore split, the clamped
    # block index for the overflow step and the in-kernel row mask.
    p_big = jax.random.normal(k1, (2, 33, 128), jnp.float32)
    t_big = jax.random.normal(k2, (2, 33, 128), jnp.float32)
    lsum_big, _ = _per_sample_sums_flat(p_big, t_big, None, max_block_rows=8)
    lsum_big = jax.block_until_ready(lsum_big)
    ref_big = jnp.sum(jnp.abs(p_big - t_big), axis=(1, 2))
    assert jnp.allclose(lsum_big, ref_big, rtol=1e-4, atol=1e-2)

    print("KERNEL_OK")
</pallas_src>

<mosaic_0001>
module attributes {stable_mosaic.version = 11 : i64} {
  func.func @kernel(%arg0: i32, %arg1: i32, %arg2: memref<2x8x128xf32, #tpu.memory_space<vmem>>, %arg3: memref<2x8x128xf32, #tpu.memory_space<vmem>>, %arg4: memref<1x2x1xf32, #tpu.memory_space<vmem>>, %arg5: memref<2x128xf32, #tpu.memory_space<vmem>>) attributes {dimension_semantics = [#tpu.dimension_semantics<parallel>, #tpu.dimension_semantics<arbitrary>], iteration_bounds = array<i64: 1, 1>, scalar_prefetch = 0 : i64, scratch_operands = 1 : i64, tpu.core_type = #tpu.core_type<tc>, window_params = [{transform_indices = @transform_0, window_bounds = array<i64: 2, 8, 128>}, {transform_indices = @transform_1, window_bounds = array<i64: 2, 8, 128>}, {transform_indices = @transform_2, window_bounds = array<i64: 1, 2, 1>}]} {
    %c0_i32 = arith.constant 0 : i32
    %0 = arith.cmpi eq, %arg1, %c0_i32 : i32
    %1 = arith.extui %0 : i1 to i32
    %c0_i32_0 = arith.constant 0 : i32
    %2 = arith.cmpi ne, %1, %c0_i32_0 : i32
    scf.if %2 {
      %cst_12 = arith.constant 0.000000e+00 : f32
      %14 = vector.broadcast %cst_12 : f32 to vector<2x128xf32>
      %c0_13 = arith.constant 0 : index
      %c0_14 = arith.constant 0 : index
      %15 = vector.load %arg5[%c0_13, %c0_14] : memref<2x128xf32, #tpu.memory_space<vmem>>, vector<2x128xf32>
      tpu.vector_store %arg5[%c0_13, %c0_14], %14 {strides = array<i32>} : memref<2x128xf32, #tpu.memory_space<vmem>>, vector<2x128xf32>,
    } else {
    }
    %c0 = arith.constant 0 : index
    %c0_1 = arith.constant 0 : index
    %c0_2 = arith.constant 0 : index
    %3 = vector.load %arg2[%c0, %c0_1, %c0_2] : memref<2x8x128xf32, #tpu.memory_space<vmem>>, vector<2x8x128xf32>
    %c0_3 = arith.constant 0 : index
    %c0_4 = arith.constant 0 : index
    %c0_5 = arith.constant 0 : index
    %4 = vector.load %arg3[%c0_3, %c0_4, %c0_5] : memref<2x8x128xf32, #tpu.memory_space<vmem>>, vector<2x8x128xf32>
    %5 = arith.subf %3, %4 : vector<2x8x128xf32>
    %6 = math.absf %5 : vector<2x8x128xf32>
    %c0_6 = arith.constant 0 : index
    %c0_7 = arith.constant 0 : index
    %7 = vector.load %arg5[%c0_6, %c0_7] : memref<2x128xf32, #tpu.memory_space<vmem>>, vector<2x128xf32>
    %cst = arith.constant dense<0.000000e+00> : vector<2x128xf32>
    %8 = vector.multi_reduction <add>, %6, %cst [1] : vector<2x8x128xf32> to vector<2x128xf32>
    %9 = arith.addf %7, %8 : vector<2x128xf32>
    %c0_8 = arith.constant 0 : index
    %c0_9 = arith.constant 0 : index
    %10 = vector.load %arg5[%c0_8, %c0_9] : memref<2x128xf32, #tpu.memory_space<vmem>>, vector<2x128xf32>
    tpu.vector_store %arg5[%c0_8, %c0_9], %9 {strides = array<i32>} : memref<2x128xf32, #tpu.memory_space<vmem>>, vector<2x128xf32>,
    %c0_i32_10 = arith.constant 0 : i32
    %11 = arith.cmpi eq, %arg1, %c0_i32_10 : i32
    %12 = arith.extui %11 : i1 to i32
    %c0_i32_11 = arith.constant 0 : i32
    %13 = arith.cmpi ne, %12, %c0_i32_11 : i32
    scf.if %13 {
      %c0_12 = arith.constant 0 : index
      %c0_13 = arith.constant 0 : index
      %14 = vector.load %arg5[%c0_12, %c0_13] : memref<2x128xf32, #tpu.memory_space<vmem>>, vector<2x128xf32>
      %cst_14 = arith.constant dense<0.000000e+00> : vector<2xf32>
      %15 = vector.multi_reduction <add>, %14, %cst_14 [1] : vector<2x128xf32> to vector<2xf32>
      %16 = vector.shape_cast %15 : vector<2xf32> to vector<2x1xf32>
      %c0_15 = arith.constant 0 : index
      %c0_16 = arith.constant 0 : index
      %c0_17 = arith.constant 0 : index
      %17 = vector.load %arg4[%c0_15, %c0_16, %c0_17] : memref<1x2x1xf32, #tpu.memory_space<vmem>>, vector<1x2x1xf32>
      %18 = vector.shape_cast %17 : vector<1x2x1xf32> to vector<2x1xf32>
      %19 = vector.shape_cast %16 : vector<2x1xf32> to vector<1x2x1xf32>
      tpu.vector_store %arg4[%c0_15, %c0_16, %c0_17], %19 {strides = array<i32>} : memref<1x2x1xf32, #tpu.memory_space<vmem>>, vector<1x2x1xf32>,
    } else {
    }
    return
  }
  func.func @transform_0(%arg0: i32, %arg1: i32) -> (i32, i32, i32) {
    %c1_i32 = arith.constant 1 : i32
    %0 = arith.muli %arg0, %c1_i32 : i32
    %1 = arith.addi %0, %arg1 : i32
    %c0_i32 = arith.constant 0 : i32
    %c0_i32_0 = arith.constant 0 : i32
    %c0_i32_1 = arith.constant 0 : i32
    return %c0_i32, %1, %c0_i32_0 : i32, i32, i32
  }
  func.func @transform_1(%arg0: i32, %arg1: i32) -> (i32, i32, i32) {
    %c1_i32 = arith.constant 1 : i32
    %0 = arith.muli %arg0, %c1_i32 : i32
    %1 = arith.addi %0, %arg1 : i32
    %c0_i32 = arith.constant 0 : i32
    %c0_i32_0 = arith.constant 0 : i32
    %c0_i32_1 = arith.constant 0 : i32
    return %c0_i32, %1, %c0_i32_0 : i32, i32, i32
  }
  func.func @transform_2(%arg0: i32, %arg1: i32) -> (i32, i32, i32) {
    %c0_i32 = arith.constant 0 : i32
    %c0_i32_0 = arith.constant 0 : i32
    %c0_i32_1 = arith.constant 0 : i32
    return %arg0, %c0_i32, %c0_i32_0 : i32, i32, i32
  }
}

</mosaic_0001>

<llo_original>
// kernel: tpu_custom_call.1
$region0: #{tpu_custom_call.1}
  #allocation0 [shape = 'u32[]', space=smem, size = 0x4, offset = 0x4, fixed_abs, tag = 'smem constant byte address 0x4 - core index']
  #allocation1 [shape = 'u32[144,128]{1,0:T(1,128)}', space=vmem, size = 0x12000, scoped, tag = 'internal scratch']
  #allocation2 [shape = 'f32[2,128]{1,0:T(2,128)}', space=vmem, size = 0x400, scoped, tag = 'scratch operand']
  %s0 = inlined_call_operand.hbm [shape: f32[2,8,128], index: 0, kind: input, shape index: {}]
  %s1 = inlined_call_operand.hbm [shape: f32[2,8,128], index: 1, kind: input, shape index: {}]
  %s2 = inlined_call_operand.vmem [shape: f32[1,2,1], index: 2, kind: output, shape index: {}]
  %s3 = sld [smem:[#allocation0]]
  $region34: #{tpu_custom_call.1} parent=0
    _
  %s5 = ssub.s32 1, %s3
  %s6 = scalar_select 0, %s5, %s3
  $region1: #{tpu_custom_call.1} parent=0
    #allocation3 [shape = 'u8[8192]{0}', space=vmem, size = 0x2000, scoped, tag = 'input window, operand 0, single buffered']
    #allocation4 [shape = 's32[1]{0}', space=sflag, size = 0x4, scoped, tag = 'scoped memory for tpu_custom_call.1']
    #allocation5 [shape = 'u8[8192]{0}', space=vmem, size = 0x2000, scoped, tag = 'input window, operand 1, single buffered']
    #allocation6 [shape = 's32[1]{0}', space=sflag, size = 0x4, scoped, tag = 'scoped memory for tpu_custom_call.1']
    %7 = vsyncpa [#allocation4], 0
    %8 = vsyncpa [#allocation6], 0
    // Predicated region
    $region2: #{tpu_custom_call.1} parent=1 // pred_check
      _
    $region3: #{tpu_custom_call.1} parent=1 // pred_check_branch
      %10 = sbr.rel (0) target = $region5
    $region4: #{tpu_custom_call.1} parent=1 // pred_region
      %s11 = sadd.s32 0, 0
      %s13 = ssub.s32 256, 256
      %14 = vsyncadd [#allocation4], %s13
      %s15 = smul.addr %s11, 128
      %s16 = scalar_lea.hbm %s0, %s15
      %s17 = sshll.u32 [#allocation3], 4
      %s18 = int_to_ptr.vmem [resolvable:$true] %s17
      %23 = dma.hbm_to_vmem [thread:$0]  %s16, 256, %s18, [#allocation4], 128, 128, 8
    $region5: #{tpu_custom_call.1} parent=1 // pred_fallthru
      _
    // Predicated region
    $region6: #{tpu_custom_call.1} parent=1 // pred_check
      _
    $region7: #{tpu_custom_call.1} parent=1 // pred_check_branch
      %25 = sbr.rel (0) target = $region9
    $region8: #{tpu_custom_call.1} parent=1 // pred_region
      %s26 = sadd.s32 0, 0
      %s28 = ssub.s32 256, 256
      %29 = vsyncadd [#allocation6], %s28
      %s30 = smul.addr %s26, 128
      %s31 = scalar_lea.hbm %s1, %s30
      %s32 = sshll.u32 [#allocation5], 4
      %s33 = int_to_ptr.vmem [resolvable:$true] %s32
      %38 = dma.hbm_to_vmem [thread:$0]  %s31, 256, %s33, [#allocation6], 128, 128, 8
    $region9: #{tpu_custom_call.1} parent=1 // pred_fallthru
      _
    // Predicated region
    $region10: #{tpu_custom_call.1} parent=1 // pred_check
      _
    $region11: #{tpu_custom_call.1} parent=1 // pred_check_branch
      %40 = sbr.rel (0) target = $region13
    $region12: #{tpu_custom_call.1} parent=1 // pred_region
      %41 = dma.done [#allocation4], 256
    $region13: #{tpu_custom_call.1} parent=1 // pred_fallthru
      _
    // Predicated region
    $region14: #{tpu_custom_call.1} parent=1 // pred_check
      _
    $region15: #{tpu_custom_call.1} parent=1 // pred_check_branch
      %43 = sbr.rel (0) target = $region17
    $region16: #{tpu_custom_call.1} parent=1 // pred_region
      %44 = dma.done [#allocation6], 256
    $region17: #{tpu_custom_call.1} parent=1 // pred_fallthru
      _
    %s45 = sadd.s32 0, 0
    %s46 = sadd.s32 0, 0
    %p47 = scmp.eq.s32.totalorder 0, 0
    // Predicated region
    $region18: #{tpu_custom_call.1} parent=1 // pred_check
      %p48 = pneg %p47
    $region19: #{tpu_custom_call.1} parent=1 // pred_check_branch
      %50 = sbr.rel (%p48) target = $region21
    $region20: #{tpu_custom_call.1} parent=1 // pred_region
      %51 = vst [vmem:[#allocation2] sm:$0x3] 0.0
    $region21: #{tpu_custom_call.1} parent=1 // pred_fallthru
      _
    %v52 = vld [vmem:[#allocation3] sm:$0xff]
    %v53 = vld [vmem:[#allocation3 + $0x8] sm:$0xff]
    %v54 = vld [vmem:[#allocation5] sm:$0xff]
    %v55 = vld [vmem:[#allocation5 + $0x8] sm:$0xff]
    %v56 = vsub.f32 %v52, %v54
    %v57 = vsub.f32 %v53, %v55
    %v58 = vand.u32 2147483647, %v56
    %v59 = vand.u32 2147483647, %v57
    %v60 = vld [vmem:[#allocation2] sm:$0x3]
    %v61 = vrot.slane %v58, 4
    %v62 = vadd.f32 %v58, %v61
    %v63 = vrot.slane %v62, 2
    %v64 = vadd.f32 %v62, %v63
    %v65 = vrot.slane %v64, 1
    %v66 = vadd.f32 %v64, %v65
    %v67 = vrot.slane %v59, 4
    %v68 = vadd.f32 %v59, %v67
    %v69 = vrot.slane %v68, 2
    %v70 = vadd.f32 %v68, %v69
    %v71 = vrot.slane %v70, 1
    %v72 = vadd.f32 %v70, %v71
    %vm75 = vcmask 1041409
    %v76 = vsel %vm75, %v72, %v66
    %v78 = vadd.f32 %v60, %v76
    %79 = vst [vmem:[#allocation2] sm:$0x3] %v78
    // Predicated region
    $region22: #{tpu_custom_call.1} parent=1 // pred_check
      %p80 = pneg %p47
    $region23: #{tpu_custom_call.1} parent=1 // pred_check_branch
      %82 = sbr.rel (%p80) target = $region25
    $region24: #{tpu_custom_call.1} parent=1 // pred_region
      %v83 = vld [vmem:[#allocation2] sm:$0x3]
      %vm84 = vcmask 1041408
      %v85 = vsel %vm84, %v83, 0.0
      %86 = vadd.xlane.f32.xlu0 %v85
      %v87 = vpop.xlane.xlu0 %86
      %vm88 = vcmask 1024
      %89 = vst.msk [vmem:[%s2] sm:$0x3] %vm88, %v87
    $region25: #{tpu_custom_call.1} parent=1 // pred_fallthru
      _
    // Predicated region
    $region26: #{tpu_custom_call.1} parent=1 // pred_check
      _
    $region27: #{tpu_custom_call.1} parent=1 // pred_check_branch
      %91 = sbr.rel (0) target = $region29
    $region28: #{tpu_custom_call.1} parent=1 // pred_region
      _
    $region29: #{tpu_custom_call.1} parent=1 // pred_fallthru
      _
    // Predicated region
    $region30: #{tpu_custom_call.1} parent=1 // pred_check
      _
    $region31: #{tpu_custom_call.1} parent=1 // pred_check_branch
      %93 = sbr.rel (0) target = $region33
    $region32: #{tpu_custom_call.1} parent=1 // pred_region
      _
    $region33: #{tpu_custom_call.1} parent=1 // pred_fallthru
      _
    %94 = vsyncpa [#allocation4], 1
    %95 = vsyncpa [#allocation6], 1

</llo_original>
